<compile_context>
chip_gen: v7x
topology: tpu7x:2x2x1
jax: 0.10.0
libtpu: 0.0.40
codegen_flags: <defaults>
</compile_context>

<pallas_src>
import jax
import jax.numpy as jnp
from jax.experimental import pallas as pl
from jax.experimental.pallas import tpu as pltpu

_INV_SQRT2 = 0.7071067811865476
_LN_EPS = 1e-5


def projection_head_kernel(x_ref, w1_ref, b1_ref, w2_ref, b2_ref,
                           gamma_ref, beta_ref, o_ref):
    # All operands arrive as f32; MXU operands are cast to bf16 in-kernel so
    # the wrapper never makes an extra HBM pass over x or the weights.
    x = x_ref[...].astype(jnp.bfloat16)      # (tile_b, E)
    w1 = w1_ref[...].astype(jnp.bfloat16)    # (E, P)  resident
    w2 = w2_ref[...].astype(jnp.bfloat16)    # (P, P)  resident
    b1 = b1_ref[...]                         # (1, P) f32
    b2 = b2_ref[...]                         # (1, P) f32
    gamma = gamma_ref[...]                   # (1, P) f32
    beta = beta_ref[...]                     # (1, P) f32

    # projected = self.projection(x)
    projected = jnp.dot(x, w1, preferred_element_type=jnp.float32) + b1

    # x = self.gelu(projected)   (nn.GELU default = exact erf form, f32)
    g = 0.5 * projected * (1.0 + jax.lax.erf(projected * _INV_SQRT2))

    # x = self.fc(x)   (bf16 into the MXU, f32 accumulate)
    h = jnp.dot(g.astype(jnp.bfloat16), w2, preferred_element_type=jnp.float32)

    # x = self.dropout(x)  -> identity at inference
    # TODO(synk): training-mode dropout (p=0.1) omitted; eval semantics only.

    # x = x + projected   (second bias add fused into the residual add)
    y = h + projected + b2

    # x = self.layer_norm(x): single-pass stats (sum + sum-of-squares reduced
    # off the same y, var = E[y^2] - mean^2), biased variance, eps=1e-5.
    inv_p = 1.0 / y.shape[-1]
    s1 = jnp.sum(y, axis=-1, keepdims=True)
    s2 = jnp.sum(y * y, axis=-1, keepdims=True)
    mean = s1 * inv_p
    var = s2 * inv_p - mean * mean
    out = (y - mean) * jax.lax.rsqrt(var + _LN_EPS) * gamma + beta

    o_ref[...] = out.astype(o_ref.dtype)


def _round_up(n, m):
    return ((n + m - 1) // m) * m


def _choose_tile_b(B, tile_b):
    # Never larger than the (8-rounded) batch.
    tile_b = min(tile_b, _round_up(B, 8))
    # Keep >= 2 grid steps once B >= 16 so v7x's second TensorCore gets work
    # (dimension_semantics=("parallel",) only helps with grid >= 2 steps).
    if B >= 16:
        tile_b = min(tile_b, max(8, _round_up(pl.cdiv(B, 2), 8)))
    return max(8, (tile_b // 8) * 8)


def _resident_spec(shape):
    # Grid-invariant block: constant index map -> DMA'd once, stays in VMEM.
    return pl.BlockSpec(shape, lambda i: (0, 0))


def projection_head(x, w1, b1, w2, b2, gamma, beta, *, tile_b=512,
                    out_dtype=jnp.float32):
    """x: [B, E] f32.  w1: [E, P], b1: [1, P], w2: [P, P], b2: [1, P],
    gamma/beta: [1, P].  Returns [B, P] (eval-mode ProjectionHead)."""
    B, E = x.shape
    P = w1.shape[1]

    tile_b = _choose_tile_b(B, tile_b)
    grid = (pl.cdiv(B, tile_b),)   # ragged last tile handled by Pallas

    cost = pl.CostEstimate(
        flops=2 * B * (E * P + P * P),
        transcendentals=B * P,
        bytes_accessed=(B * E * 4                       # x (f32 in)
                        + (E * P + P * P + 4 * P) * 4   # weights + params (f32)
                        + B * P * jnp.dtype(out_dtype).itemsize),  # output
    )

    return pl.pallas_call(
        projection_head_kernel,
        out_shape=jax.ShapeDtypeStruct((B, P), out_dtype),
        grid_spec=pltpu.PrefetchScalarGridSpec(
            num_scalar_prefetch=0,
            grid=grid,
            in_specs=[
                pl.BlockSpec((tile_b, E), lambda i: (i, 0)),  # x tile (streamed)
                _resident_spec((E, P)),                       # W1
                _resident_spec((1, P)),                       # b1
                _resident_spec((P, P)),                       # W2
                _resident_spec((1, P)),                       # b2
                _resident_spec((1, P)),                       # ln gamma
                _resident_spec((1, P)),                       # ln beta
            ],
            out_specs=pl.BlockSpec((tile_b, P), lambda i: (i, 0)),
        ),
        compiler_params=pltpu.CompilerParams(
            dimension_semantics=("parallel",),
            vmem_limit_bytes=32 << 20,
        ),
        cost_estimate=cost,
    )(x, w1, b1, w2, b2, gamma, beta)


def _reference(x, w1, b1, w2, b2, gamma, beta):
    # Pure-JAX reference matching the kernel's mixed precision (bf16 MXU
    # operands, f32 accumulation / epilogue).
    xf = x.astype(jnp.bfloat16).astype(jnp.float32)
    w1f = w1.astype(jnp.bfloat16).astype(jnp.float32)
    w2f = w2.astype(jnp.bfloat16).astype(jnp.float32)
    proj = xf @ w1f + b1
    g = 0.5 * proj * (1.0 + jax.lax.erf(proj * _INV_SQRT2))
    gf = g.astype(jnp.bfloat16).astype(jnp.float32)
    y = gf @ w2f + proj + b2
    mu = y.mean(-1, keepdims=True)
    var = ((y - mu) ** 2).mean(-1, keepdims=True)
    return (y - mu) * jax.lax.rsqrt(var + _LN_EPS) * gamma + beta


if __name__ == "__main__":
    # Small, forward-consistent shapes (embedding_dim -> projection_dim=256).
    B = 20           # batch (not a multiple of the tile: exercises ragged tile)
    E = 32           # embedding_dim
    P = 256          # CFG.projection_dim

    key = jax.random.PRNGKey(0)
    kx, kw1, kb1, kw2, kb2 = jax.random.split(key, 5)

    x = jax.random.normal(kx, (B, E), dtype=jnp.float32)

    # Deterministic synthetic parameters (Linear weights stored as [in, out]).
    w1 = jax.random.normal(kw1, (E, P), dtype=jnp.float32) * (1.0 / jnp.sqrt(E))
    b1 = jax.random.normal(kb1, (1, P), dtype=jnp.float32) * 0.01
    w2 = jax.random.normal(kw2, (P, P), dtype=jnp.float32) * (1.0 / jnp.sqrt(P))
    b2 = jax.random.normal(kb2, (1, P), dtype=jnp.float32) * 0.01
    gamma = jnp.ones((1, P), dtype=jnp.float32)   # LayerNorm default init
    beta = jnp.zeros((1, P), dtype=jnp.float32)

    # Default path: tile_b heuristic picks 16 -> grid=(2,), ragged last tile.
    out = projection_head(x, w1, b1, w2, b2, gamma, beta)
    out = jax.block_until_ready(out)

    # Small-tile path: tile_b=8 -> grid=(3,), ragged last tile.
    out_small = projection_head(x, w1, b1, w2, b2, gamma, beta, tile_b=8)
    out_small = jax.block_until_ready(out_small)

    ref = _reference(x, w1, b1, w2, b2, gamma, beta)
    assert out.shape == (B, P)
    assert out_small.shape == (B, P)
    assert jnp.max(jnp.abs(out - ref)) < 2e-2
    assert jnp.max(jnp.abs(out_small - ref)) < 2e-2

    print("KERNEL_OK")
</pallas_src>

<mosaic_0001>
module attributes {stable_mosaic.version = 11 : i64} {
  func.func @projection_head_kernel(%arg0: i32, %arg1: memref<16x32xf32, #tpu.memory_space<vmem>>, %arg2: memref<32x256xf32, #tpu.memory_space<vmem>>, %arg3: memref<1x256xf32, #tpu.memory_space<vmem>>, %arg4: memref<256x256xf32, #tpu.memory_space<vmem>>, %arg5: memref<1x256xf32, #tpu.memory_space<vmem>>, %arg6: memref<1x256xf32, #tpu.memory_space<vmem>>, %arg7: memref<1x256xf32, #tpu.memory_space<vmem>>, %arg8: memref<16x256xf32, #tpu.memory_space<vmem>>) attributes {dimension_semantics = [#tpu.dimension_semantics<parallel>], iteration_bounds = array<i64: 2>, scalar_prefetch = 0 : i64, scratch_operands = 0 : i64, tpu.core_type = #tpu.core_type<tc>, window_params = [{transform_indices = @transform_0, window_bounds = array<i64: 16, 32>}, {pipeline_mode = #tpu.pipeline_mode<synchronous>, transform_indices = @transform_1, window_bounds = array<i64: 32, 256>}, {pipeline_mode = #tpu.pipeline_mode<synchronous>, transform_indices = @transform_2, window_bounds = array<i64: 1, 256>}, {pipeline_mode = #tpu.pipeline_mode<synchronous>, transform_indices = @transform_3, window_bounds = array<i64: 256, 256>}, {pipeline_mode = #tpu.pipeline_mode<synchronous>, transform_indices = @transform_4, window_bounds = array<i64: 1, 256>}, {pipeline_mode = #tpu.pipeline_mode<synchronous>, transform_indices = @transform_5, window_bounds = array<i64: 1, 256>}, {pipeline_mode = #tpu.pipeline_mode<synchronous>, transform_indices = @transform_6, window_bounds = array<i64: 1, 256>}, {transform_indices = @transform_7, window_bounds = array<i64: 16, 256>}]} {
    %c0 = arith.constant 0 : index
    %c0_0 = arith.constant 0 : index
    %0 = vector.load %arg1[%c0, %c0_0] : memref<16x32xf32, #tpu.memory_space<vmem>>, vector<16x32xf32>
    %1 = arith.truncf %0 : vector<16x32xf32> to vector<16x32xbf16>
    %c0_1 = arith.constant 0 : index
    %c0_2 = arith.constant 0 : index
    %2 = vector.load %arg2[%c0_1, %c0_2] : memref<32x256xf32, #tpu.memory_space<vmem>>, vector<32x256xf32>
    %3 = arith.truncf %2 : vector<32x256xf32> to vector<32x256xbf16>
    %c0_3 = arith.constant 0 : index
    %c0_4 = arith.constant 0 : index
    %4 = vector.load %arg4[%c0_3, %c0_4] : memref<256x256xf32, #tpu.memory_space<vmem>>, vector<256x256xf32>
    %5 = arith.truncf %4 : vector<256x256xf32> to vector<256x256xbf16>
    %c0_5 = arith.constant 0 : index
    %c0_6 = arith.constant 0 : index
    %6 = vector.load %arg3[%c0_5, %c0_6] : memref<1x256xf32, #tpu.memory_space<vmem>>, vector<1x256xf32>
    %c0_7 = arith.constant 0 : index
    %c0_8 = arith.constant 0 : index
    %7 = vector.load %arg5[%c0_7, %c0_8] : memref<1x256xf32, #tpu.memory_space<vmem>>, vector<1x256xf32>
    %c0_9 = arith.constant 0 : index
    %c0_10 = arith.constant 0 : index
    %8 = vector.load %arg6[%c0_9, %c0_10] : memref<1x256xf32, #tpu.memory_space<vmem>>, vector<1x256xf32>
    %c0_11 = arith.constant 0 : index
    %c0_12 = arith.constant 0 : index
    %9 = vector.load %arg7[%c0_11, %c0_12] : memref<1x256xf32, #tpu.memory_space<vmem>>, vector<1x256xf32>
    %cst = arith.constant dense<0.000000e+00> : vector<16x256xf32>
    %10 = tpu.matmul %1, %3, %cst {dimension_numbers = #tpu.dot_dimension_numbers<[1], [0], [0], [1], [0, 0, 1, 1], [], []>} : vector<16x32xbf16>, vector<32x256xbf16>, vector<16x256xf32> -> vector<16x256xf32>
    %11 = vector.broadcast %6 : vector<1x256xf32> to vector<16x256xf32>
    %12 = arith.addf %10, %11 : vector<16x256xf32>
    %cst_13 = arith.constant 5.000000e-01 : f32
    %13 = vector.broadcast %cst_13 : f32 to vector<16x256xf32>
    %14 = arith.mulf %13, %12 : vector<16x256xf32>
    %cst_14 = arith.constant 0.707106769 : f32
    %15 = vector.broadcast %cst_14 : f32 to vector<16x256xf32>
    %16 = arith.mulf %12, %15 : vector<16x256xf32>
    %17 = math.erf %16 : vector<16x256xf32>
    %cst_15 = arith.constant 1.000000e+00 : f32
    %18 = vector.broadcast %cst_15 : f32 to vector<16x256xf32>
    %19 = arith.addf %18, %17 : vector<16x256xf32>
    %20 = arith.mulf %14, %19 : vector<16x256xf32>
    %21 = arith.truncf %20 : vector<16x256xf32> to vector<16x256xbf16>
    %cst_16 = arith.constant dense<0.000000e+00> : vector<16x256xf32>
    %22 = tpu.matmul %21, %5, %cst_16 {dimension_numbers = #tpu.dot_dimension_numbers<[1], [0], [0], [1], [0, 0, 1, 1], [], []>} : vector<16x256xbf16>, vector<256x256xbf16>, vector<16x256xf32> -> vector<16x256xf32>
    %23 = arith.addf %22, %12 : vector<16x256xf32>
    %24 = vector.broadcast %7 : vector<1x256xf32> to vector<16x256xf32>
    %25 = arith.addf %23, %24 : vector<16x256xf32>
    %cst_17 = arith.constant dense<0.000000e+00> : vector<16xf32>
    %26 = vector.multi_reduction <add>, %25, %cst_17 [1] : vector<16x256xf32> to vector<16xf32>
    %27 = vector.shape_cast %26 : vector<16xf32> to vector<16x1xf32>
    %28 = arith.mulf %25, %25 : vector<16x256xf32>
    %cst_18 = arith.constant dense<0.000000e+00> : vector<16xf32>
    %29 = vector.multi_reduction <add>, %28, %cst_18 [1] : vector<16x256xf32> to vector<16xf32>
    %30 = vector.shape_cast %29 : vector<16xf32> to vector<16x1xf32>
    %cst_19 = arith.constant 3.906250e-03 : f32
    %31 = vector.broadcast %cst_19 : f32 to vector<16x1xf32>
    %32 = arith.mulf %27, %31 : vector<16x1xf32>
    %cst_20 = arith.constant 3.906250e-03 : f32
    %33 = vector.broadcast %cst_20 : f32 to vector<16x1xf32>
    %34 = arith.mulf %30, %33 : vector<16x1xf32>
    %35 = arith.mulf %32, %32 : vector<16x1xf32>
    %36 = arith.subf %34, %35 : vector<16x1xf32>
    %37 = vector.broadcast %32 : vector<16x1xf32> to vector<16x256xf32>
    %38 = arith.subf %25, %37 : vector<16x256xf32>
    %cst_21 = arith.constant 9.99999974E-6 : f32
    %39 = vector.broadcast %cst_21 : f32 to vector<16x1xf32>
    %40 = arith.addf %36, %39 : vector<16x1xf32>
    %41 = math.rsqrt %40 : vector<16x1xf32>
    %42 = vector.broadcast %41 : vector<16x1xf32> to vector<16x256xf32>
    %43 = arith.mulf %38, %42 : vector<16x256xf32>
    %44 = vector.broadcast %8 : vector<1x256xf32> to vector<16x256xf32>
    %45 = arith.mulf %43, %44 : vector<16x256xf32>
    %46 = vector.broadcast %9 : vector<1x256xf32> to vector<16x256xf32>
    %47 = arith.addf %45, %46 : vector<16x256xf32>
    %c0_22 = arith.constant 0 : index
    %c0_23 = arith.constant 0 : index
    %48 = vector.load %arg8[%c0_22, %c0_23] : memref<16x256xf32, #tpu.memory_space<vmem>>, vector<16x256xf32>
    tpu.vector_store %arg8[%c0_22, %c0_23], %47 {strides = array<i32>} : memref<16x256xf32, #tpu.memory_space<vmem>>, vector<16x256xf32>,
    return
  }
  func.func @transform_0(%arg0: i32) -> (i32, i32) {
    %c0_i32 = arith.constant 0 : i32
    %c0_i32_0 = arith.constant 0 : i32
    return %arg0, %c0_i32 : i32, i32
  }
  func.func @transform_1(%arg0: i32) -> (i32, i32) {
    %c0_i32 = arith.constant 0 : i32
    %c0_i32_0 = arith.constant 0 : i32
    %c0_i32_1 = arith.constant 0 : i32
    return %c0_i32, %c0_i32_0 : i32, i32
  }
  func.func @transform_2(%arg0: i32) -> (i32, i32) {
    %c0_i32 = arith.constant 0 : i32
    %c0_i32_0 = arith.constant 0 : i32
    %c0_i32_1 = arith.constant 0 : i32
    return %c0_i32, %c0_i32_0 : i32, i32
  }
  func.func @transform_3(%arg0: i32) -> (i32, i32) {
    %c0_i32 = arith.constant 0 : i32
    %c0_i32_0 = arith.constant 0 : i32
    %c0_i32_1 = arith.constant 0 : i32
    return %c0_i32, %c0_i32_0 : i32, i32
  }
  func.func @transform_4(%arg0: i32) -> (i32, i32) {
    %c0_i32 = arith.constant 0 : i32
    %c0_i32_0 = arith.constant 0 : i32
    %c0_i32_1 = arith.constant 0 : i32
    return %c0_i32, %c0_i32_0 : i32, i32
  }
  func.func @transform_5(%arg0: i32) -> (i32, i32) {
    %c0_i32 = arith.constant 0 : i32
    %c0_i32_0 = arith.constant 0 : i32
    %c0_i32_1 = arith.constant 0 : i32
    return %c0_i32, %c0_i32_0 : i32, i32
  }
  func.func @transform_6(%arg0: i32) -> (i32, i32) {
    %c0_i32 = arith.constant 0 : i32
    %c0_i32_0 = arith.constant 0 : i32
    %c0_i32_1 = arith.constant 0 : i32
    return %c0_i32, %c0_i32_0 : i32, i32
  }
  func.func @transform_7(%arg0: i32) -> (i32, i32) {
    %c0_i32 = arith.constant 0 : i32
    %c0_i32_0 = arith.constant 0 : i32
    return %arg0, %c0_i32 : i32, i32
  }
}

</mosaic_0001>

<llo_original>
// kernel: tpu_custom_call.1
$region0: #{tpu_custom_call.1}
  #allocation0 [shape = 'u32[]', space=smem, size = 0x4, offset = 0x4, fixed_abs, tag = 'smem constant byte address 0x4 - core index']
  #allocation1 [shape = 'u32[144,128]{1,0:T(1,128)}', space=vmem, size = 0x12000, scoped, tag = 'internal scratch']
  %s0 = inlined_call_operand.hbm [shape: f32[20,32], index: 0, kind: input, shape index: {}]
  %s1 = inlined_call_operand.hbm [shape: f32[32,256], index: 1, kind: input, shape index: {}]
  %s2 = inlined_call_operand.vmem [shape: f32[1,256], index: 2, kind: input, shape index: {}]
  %s3 = inlined_call_operand.hbm [shape: f32[256,256], index: 3, kind: input, shape index: {}]
  %s4 = inlined_call_operand.vmem [shape: f32[1,256], index: 4, kind: input, shape index: {}]
  %s5 = inlined_call_operand.vmem [shape: f32[1,256], index: 5, kind: input, shape index: {}]
  %s6 = inlined_call_operand.vmem [shape: f32[1,256], index: 6, kind: input, shape index: {}]
  %s7 = inlined_call_operand.hbm [shape: f32[20,256], index: 7, kind: output, shape index: {}]
  %s8 = sld [smem:[#allocation0]]
  $region73: #{tpu_custom_call.1} parent=0
    _
  %s10 = ssub.s32 1, %s8
  %s11 = scalar_select 0, %s10, %s8
  $region1: #{tpu_custom_call.1} parent=0
    #allocation2 [shape = 'u8[16384]{0}', space=vmem, size = 0x4000, scoped, tag = 'input window, operand 0']
    #allocation3 [shape = 's32[2]{0}', space=sflag, size = 0x8, scoped, tag = 'scoped memory for tpu_custom_call.1']
    #allocation4 [shape = 's32[2]{0}', space=sflag, size = 0x8, scoped, tag = 'scoped memory for tpu_custom_call.1']
    #allocation5 [shape = 'u8[32768]{0}', space=vmem, size = 0x8000, scoped, tag = 'input window, operand 1, single buffered']
    #allocation6 [shape = 's32[1]{0}', space=sflag, size = 0x4, scoped, tag = 'scoped memory for tpu_custom_call.1']
    #allocation7 [shape = 'u8[262144]{0}', space=vmem, size = 0x40000, scoped, tag = 'input window, operand 3, single buffered']
    #allocation8 [shape = 'u8[32768]{0}', space=vmem, size = 0x8000, scoped, tag = 'output window, operand 0']
    %12 = vsyncpa [#allocation3], 0
    %s13 = scalar_lea.sflag [#allocation3], 1
    %14 = vsyncpa %s13, 0
    %15 = vsyncpa [#allocation6], 0
    %16 = vsyncpa [#allocation4], 0
    %s17 = scalar_lea.sflag [#allocation4], 1
    %18 = vsyncpa %s17, 0
    loop: start=0, step=1, limit=4
    $region2: #{tpu_custom_call.1} parent=1 // loop_pre_header
      _
    $region3: #{tpu_custom_call.1} parent=1 // loop_header
      %s20 = sphi 0, %s24
      %p21 = scmp.ge.s32.totalorder %s20, 4
      %s30 = sphi 0, %s32
      %s33 = sphi 0, %s30
      %s34 = sphi 0, %s33
      %s50 = sphi 0, %s34
      %s54 = sphi 0, %s54
      %s56 = sphi 0, %s54
      %s57 = sphi 0, %s56
      %s71 = sphi 0, %s57
      %s75 = sphi 0, %s75
      %s77 = sphi 0, %s75
      %s78 = sphi 0, %s77
      %s92 = sphi 0, %s78
      %s96 = sphi 0, %s96
      %s98 = sphi 0, %s96
      %s99 = sphi 0, %s98
      %s113 = sphi 0, %s99
      %s117 = sphi 0, %s117
      %s119 = sphi 0, %s117
      %s120 = sphi 0, %s119
      %s134 = sphi 0, %s120
      %s138 = sphi 0, %s138
      %s140 = sphi 0, %s138
      %s141 = sphi 0, %s140
      %s155 = sphi 0, %s141
      %s159 = sphi 0, %s159
      %s161 = sphi 0, %s159
      %s162 = sphi 0, %s161
      %s176 = sphi 0, %s162
      %s182 = sphi 0, %s184
      %s185 = sphi 0, %s182
      %s186 = sphi 0, %s185
      %s202 = sphi 0, %s186
    $region4: #{tpu_custom_call.1} parent=1 // loop_header_branch
      %23 = sbr.rel (%p21) target = $region8
    $region5: #{tpu_custom_call.1} parent=1 // loop_body
      %s25 = ssub.s32 %s20, 1
      %s26 = ssub.s32 %s20, 2
      %s27 = sadd.s32 %s20, 1
      %s28 = ssub.s32 %s20, %s27
      %p29 = scmp.eq.s32.totalorder %s28, 0
      %s31 = sadd.s32 %s30, 1
      %s32 = scalar_select %p29, %s30, %s31
      %p35 = pneg %p29
      %p36 = scmp.eq.s32.totalorder %s20, 1
      %p37 = por %p35, %p36
      %p38 = scmp.ne.s32.totalorder %s30, %s33
      %p39 = scmp.eq.s32.totalorder %s20, 0
      %p40 = por %p38, %p39
      %p41 = scmp.ne.s32.totalorder %s30, %s33
      %p42 = scmp.eq.s32.totalorder %s25, 1
      %p43 = por %p41, %p42
      %p44 = scmp.ne.s32.totalorder %s33, %s34
      %p45 = scmp.eq.s32.totalorder %s25, 0
      %p46 = por %p44, %p45
      %p47 = scmp.ne.s32.totalorder %s33, %s34
      %p48 = scmp.eq.s32.totalorder %s26, 1
      %p49 = por %p47, %p48
      %p51 = scmp.ne.s32.totalorder %s34, %s50
      %p52 = scmp.eq.s32.totalorder %s26, 0
      %p53 = por %p51, %p52
      %s55 = sadd.s32 %s54, 1
      %p58 = scmp.eq.s32.totalorder %s20, 1
      %p59 = scmp.ne.s32.totalorder %s54, %s56
      %p60 = scmp.eq.s32.totalorder %s20, 0
      %p61 = por %p59, %p60
      %p62 = scmp.ne.s32.totalorder %s54, %s56
      %p63 = scmp.eq.s32.totalorder %s25, 1
      %p64 = por %p62, %p63
      %p65 = scmp.ne.s32.totalorder %s56, %s57
      %p66 = scmp.eq.s32.totalorder %s25, 0
      %p67 = por %p65, %p66
      %p68 = scmp.ne.s32.totalorder %s56, %s57
      %p69 = scmp.eq.s32.totalorder %s26, 1
      %p70 = por %p68, %p69
      %p72 = scmp.ne.s32.totalorder %s57, %s71
      %p73 = scmp.eq.s32.totalorder %s26, 0
      %p74 = por %p72, %p73
      %s76 = sadd.s32 %s75, 1
      %p79 = scmp.eq.s32.totalorder %s20, 1
      %p80 = scmp.ne.s32.totalorder %s75, %s77
      %p81 = scmp.eq.s32.totalorder %s20, 0
      %p82 = por %p80, %p81
      %p83 = scmp.ne.s32.totalorder %s75, %s77
      %p84 = scmp.eq.s32.totalorder %s25, 1
      %p85 = por %p83, %p84
      %p86 = scmp.ne.s32.totalorder %s77, %s78
      %p87 = scmp.eq.s32.totalorder %s25, 0
      %p88 = por %p86, %p87
      %p89 = scmp.ne.s32.totalorder %s77, %s78
      %p90 = scmp.eq.s32.totalorder %s26, 1
      %p91 = por %p89, %p90
      %p93 = scmp.ne.s32.totalorder %s78, %s92
      %p94 = scmp.eq.s32.totalorder %s26, 0
      %p95 = por %p93, %p94
      %s97 = sadd.s32 %s96, 1
      %p100 = scmp.eq.s32.totalorder %s20, 1
      %p101 = scmp.ne.s32.totalorder %s96, %s98
      %p102 = scmp.eq.s32.totalorder %s20, 0
      %p103 = por %p101, %p102
      %p104 = scmp.ne.s32.totalorder %s96, %s98
      %p105 = scmp.eq.s32.totalorder %s25, 1
      %p106 = por %p104, %p105
      %p107 = scmp.ne.s32.totalorder %s98, %s99
      %p108 = scmp.eq.s32.totalorder %s25, 0
      %p109 = por %p107, %p108
      %p110 = scmp.ne.s32.totalorder %s98, %s99
      %p111 = scmp.eq.s32.totalorder %s26, 1
      %p112 = por %p110, %p111
      %p114 = scmp.ne.s32.totalorder %s99, %s113
      %p115 = scmp.eq.s32.totalorder %s26, 0
      %p116 = por %p114, %p115
      %s118 = sadd.s32 %s117, 1
      %p121 = scmp.eq.s32.totalorder %s20, 1
      %p122 = scmp.ne.s32.totalorder %s117, %s119
      %p123 = scmp.eq.s32.totalorder %s20, 0
      %p124 = por %p122, %p123
      %p125 = scmp.ne.s32.totalorder %s117, %s119
      %p126 = scmp.eq.s32.totalorder %s25, 1
      %p127 = por %p125, %p126
      %p128 = scmp.ne.s32.totalorder %s119, %s120
      %p129 = scmp.eq.s32.totalorder %s25, 0
      %p130 = por %p128, %p129
      %p131 = scmp.ne.s32.totalorder %s119, %s120
      %p132 = scmp.eq.s32.totalorder %s26, 1
      %p133 = por %p131, %p132
      %p135 = scmp.ne.s32.totalorder %s120, %s134
      %p136 = scmp.eq.s32.totalorder %s26, 0
      %p137 = por %p135, %p136
      %s139 = sadd.s32 %s138, 1
      %p142 = scmp.eq.s32.totalorder %s20, 1
      %p143 = scmp.ne.s32.totalorder %s138, %s140
      %p144 = scmp.eq.s32.totalorder %s20, 0
      %p145 = por %p143, %p144
      %p146 = scmp.ne.s32.totalorder %s138, %s140
      %p147 = scmp.eq.s32.totalorder %s25, 1
      %p148 = por %p146, %p147
      %p149 = scmp.ne.s32.totalorder %s140, %s141
      %p150 = scmp.eq.s32.totalorder %s25, 0
      %p151 = por %p149, %p150
      %p152 = scmp.ne.s32.totalorder %s140, %s141
      %p153 = scmp.eq.s32.totalorder %s26, 1
      %p154 = por %p152, %p153
      %p156 = scmp.ne.s32.totalorder %s141, %s155
      %p157 = scmp.eq.s32.totalorder %s26, 0
      %p158 = por %p156, %p157
      %s160 = sadd.s32 %s159, 1
      %p163 = scmp.eq.s32.totalorder %s20, 1
      %p164 = scmp.ne.s32.totalorder %s159, %s161
      %p165 = scmp.eq.s32.totalorder %s20, 0
      %p166 = por %p164, %p165
      %p167 = scmp.ne.s32.totalorder %s159, %s161
      %p168 = scmp.eq.s32.totalorder %s25, 1
      %p169 = por %p167, %p168
      %p170 = scmp.ne.s32.totalorder %s161, %s162
      %p171 = scmp.eq.s32.totalorder %s25, 0
      %p172 = por %p170, %p171
      %p173 = scmp.ne.s32.totalorder %s161, %s162
      %p174 = scmp.eq.s32.totalorder %s26, 1
      %p175 = por %p173, %p174
      %p177 = scmp.ne.s32.totalorder %s162, %s176
      %p178 = scmp.eq.s32.totalorder %s26, 0
      %p179 = por %p177, %p178
      %s180 = ssub.s32 %s20, %s27
      %p181 = scmp.eq.s32.totalorder %s180, 0
      %s183 = sadd.s32 %s182, 1
      %s184 = scalar_select %p181, %s182, %s183
      %p187 = pneg %p181
      %p188 = scmp.eq.s32.totalorder %s20, 1
      %p189 = por %p187, %p188
      %p190 = scmp.ne.s32.totalorder %s182, %s185
      %p191 = scmp.eq.s32.totalorder %s20, 0
      %p192 = por %p190, %p191
      %p193 = scmp.ne.s32.totalorder %s182, %s185
      %p194 = scmp.eq.s32.totalorder %s25, 1
      %p195 = por %p193, %p194
      %p196 = scmp.ne.s32.totalorder %s185, %s186
      %p197 = scmp.eq.s32.totalorder %s25, 0
      %p198 = por %p196, %p197
      %p199 = scmp.ne.s32.totalorder %s185, %s186
      %p200 = scmp.eq.s32.totalorder %s26, 1
      %p201 = por %p199, %p200
      %p203 = scmp.ne.s32.totalorder %s186, %s202
      %p204 = scmp.eq.s32.totalorder %s26, 0
      %p205 = por %p203, %p204
      %p206 = scmp.le.s32.totalorder 1, %s20
      %p207 = scmp.lt.s32.totalorder %s20, 3
      %p208 = pnand %p206, %p207
      %p209 = pneg %p208
      // Predicated region
      $region9: #{tpu_custom_call.1} parent=5 // pred_check
        _
      $region10: #{tpu_custom_call.1} parent=5 // pred_check_branch
        %211 = sbr.rel (%p208) target = $region12
      $region11: #{tpu_custom_call.1} parent=5 // pred_region
        %s212 = ssub.s32 %s20, 1
        // Predicated region
        $region13: #{tpu_custom_call.1} parent=11 // pred_check
          %p213 = pneg %p67
        $region14: #{tpu_custom_call.1} parent=11 // pred_check_branch
          %215 = sbr.rel (%p213) target = $region16
        $region15: #{tpu_custom_call.1} parent=11 // pred_region
          %s217 = ssub.s32 1024, 1024
          %218 = vsyncadd [#allocation6], %s217
          %s219 = sshll.u32 [#allocation5], 4
          %s220 = int_to_ptr.vmem [resolvable:$true] %s219
          %225 = dma.hbm_to_vmem [thread:$0]  %s1, 1024, %s220, [#allocation6], 256, 256, 16
        $region16: #{tpu_custom_call.1} parent=11 // pred_fallthru
          _
        // Predicated region
        $region17: #{tpu_custom_call.1} parent=11 // pred_check
          %p226 = pneg %p88
        $region18: #{tpu_custom_call.1} parent=11 // pred_check_branch
          %228 = sbr.rel (%p226) target = $region20
        $region19: #{tpu_custom_call.1} parent=11 // pred_region
          _
        $region20: #{tpu_custom_call.1} parent=11 // pred_fallthru
          _
        // Predicated region
        $region21: #{tpu_custom_call.1} parent=11 // pred_check
          %p229 = pneg %p109
        $region22: #{tpu_custom_call.1} parent=11 // pred_check_branch
          %231 = sbr.rel (%p229) target = $region24
        $region23: #{tpu_custom_call.1} parent=11 // pred_region
          %s233 = ssub.s32 8192, 8192
          %234 = vsyncadd [#allocation6], %s233
          %s235 = sshll.u32 [#allocation7], 4
          %s236 = int_to_ptr.vmem [resolvable:$true] %s235
          %241 = dma.hbm_to_vmem [thread:$0]  %s3, 8192, %s236, [#allocation6], 256, 256, 16
        $region24: #{tpu_custom_call.1} parent=11 // pred_fallthru
          _
        // Predicated region
        $region25: #{tpu_custom_call.1} parent=11 // pred_check
          %p242 = pneg %p130
        $region26: #{tpu_custom_call.1} parent=11 // pred_check_branch
          %244 = sbr.rel (%p242) target = $region28
        $region27: #{tpu_custom_call.1} parent=11 // pred_region
          _
        $region28: #{tpu_custom_call.1} parent=11 // pred_fallthru
          _
        // Predicated region
        $region29: #{tpu_custom_call.1} parent=11 // pred_check
          %p245 = pneg %p151
        $region30: #{tpu_custom_call.1} parent=11 // pred_check_branch
          %247 = sbr.rel (%p245) target = $region32
        $region31: #{tpu_custom_call.1} parent=11 // pred_region
          _
        $region32: #{tpu_custom_call.1} parent=11 // pred_fallthru
          _
        // Predicated region
        $region33: #{tpu_custom_call.1} parent=11 // pred_check
          %p248 = pneg %p172
        $region34: #{tpu_custom_call.1} parent=11 // pred_check_branch
          %250 = sbr.rel (%p248) target = $region36
        $region35: #{tpu_custom_call.1} parent=11 // pred_region
          _
        $region36: #{tpu_custom_call.1} parent=11 // pred_fallthru
          _
      $region12: #{tpu_custom_call.1} parent=5 // pred_fallthru
        _
      %p251 = scmp.lt.s32.totalorder %s20, 2
      // Predicated region
      $region37: #{tpu_custom_call.1} parent=5 // pred_check
        %p252 = pneg %p251
      $region38: #{tpu_custom_call.1} parent=5 // pred_check_branch
        %254 = sbr.rel (%p252) target = $region40
      $region39: #{tpu_custom_call.1} parent=5 // pred_region
        // Predicated region
        $region41: #{tpu_custom_call.1} parent=39 // pred_check
          %p255 = pneg %p40
        $region42: #{tpu_custom_call.1} parent=39 // pred_check_branch
          %257 = sbr.rel (%p255) target = $region44
        $region43: #{tpu_custom_call.1} parent=39 // pred_region
          %s258 = sand.u32 %s30, 1
          %s259 = scalar_lea.sflag [#allocation3], %s258
          %s260 = sand.u32 %s30, 1
          %s261 = smul.addr %s260, 16
          %s262 = scalar_lea.vmem [#allocation2], %s261
          %s263 = smul.u32 2, %s20
          %s264 = ssub.s32 3, %s263
          %p265 = scmp.lt.s32.totalorder %s264, 2
          %s266 = scalar_select %p265, %s264, 2
          %s267 = smul.u32 128, %s266
          %s269 = ssub.s32 256, %s267
          %270 = vsyncadd %s259, %s269
          %p271 = scmp.ne.s32.totalorder 0, %s267
          %s272 = smul.addr %s263, 128
          %s273 = scalar_lea.hbm %s0, %s272
          %s274 = smul.u32 8, %s266
          %s275 = sshll.u32 %s262, 4
          %s276 = int_to_ptr.vmem [resolvable:$true] %s275
          %s277 = sshll.u32 %s274, 4
          %281 = dma.hbm_to_vmem [thread:$0]  (%p271), %s273, %s277, %s276, %s259, 128, 128, 8
        $region44: #{tpu_custom_call.1} parent=39 // pred_fallthru
          _
      $region40: #{tpu_custom_call.1} parent=5 // pred_fallthru
        _
      %p282 = scmp.le.s32.totalorder 1, %s20
      %p283 = scmp.lt.s32.totalorder %s20, 3
      %p284 = pnand %p282, %p283
      %p285 = pneg %p284
      // Predicated region
      $region45: #{tpu_custom_call.1} parent=5 // pred_check
        _
      $region46: #{tpu_custom_call.1} parent=5 // pred_check_branch
        %287 = sbr.rel (%p284) target = $region48
      $region47: #{tpu_custom_call.1} parent=5 // pred_region
        %s288 = ssub.s32 %s20, 1
        %s289 = sand.u32 %s33, 1
        %s290 = scalar_lea.sflag [#allocation3], %s289
        %s291 = sand.u32 %s33, 1
        %s292 = smul.addr %s291, 16
        %s293 = scalar_lea.vmem [#allocation2], %s292
        // Predicated region
        $region49: #{tpu_custom_call.1} parent=47 // pred_check
          %p294 = pneg %p46
        $region50: #{tpu_custom_call.1} parent=47 // pred_check_branch
          %296 = sbr.rel (%p294) target = $region52
        $region51: #{tpu_custom_call.1} parent=47 // pred_region
          %297 = dma.done %s290, 256
        $region52: #{tpu_custom_call.1} parent=47 // pred_fallthru
          _
        // Predicated region
        $region53: #{tpu_custom_call.1} parent=47 // pred_check
          %p298 = pneg %p67
        $region54: #{tpu_custom_call.1} parent=47 // pred_check_branch
          %300 = sbr.rel (%p298) target = $region56
        $region55: #{tpu_custom_call.1} parent=47 // pred_region
          %301 = dma.done [#allocation6], 1024
        $region56: #{tpu_custom_call.1} parent=47 // pred_fallthru
          _
        // Predicated region
        $region57: #{tpu_custom_call.1} parent=47 // pred_check
          %p302 = pneg %p109
        $region58: #{tpu_custom_call.1} parent=47 // pred_check_branch
          %304 = sbr.rel (%p302) target = $region60
        $region59: #{tpu_custom_call.1} parent=47 // pred_region
          %305 = dma.done [#allocation6], 8192
        $region60: #{tpu_custom_call.1} parent=47 // pred_fallthru
          _
        %s306 = sand.u32 %s33, 1
        %s307 = scalar_lea.sflag [#allocation3], %s306
        %s308 = sand.u32 %s33, 1
        %s309 = smul.addr %s308, 16
        %s310 = scalar_lea.vmem [#allocation2], %s309
        %p311 = pneg %p46
        %p312 = pneg %p43
        %p313 = pneg %p67
        %p314 = pneg %p64
        %p315 = pneg %p88
        %p316 = pneg %p85
        %p317 = pneg %p109
        %p318 = pneg %p106
        %p319 = pneg %p130
        %p320 = pneg %p127
        %p321 = pneg %p151
        %p322 = pneg %p148
        %p323 = pneg %p172
        %p324 = pneg %p169
        %p325 = pneg %p198
        %p326 = pneg %p195
        %s327 = sand.u32 %s185, 1
        %s328 = scalar_lea.sflag [#allocation4], %s327
        %s329 = sand.u32 %s185, 1
        %s330 = smul.addr %s329, 32
        %s331 = scalar_lea.vmem [#allocation8], %s330
        %s332 = smul.u32 2, %s25
        %s333 = ssub.s32 3, %s332
        %p334 = scmp.lt.s32.totalorder %s333, 2
        %s335 = scalar_select %p334, %s333, 2
        %s336 = smul.u32 128, %s335
        %s337 = smul.u32 2, %s25
        %s338 = ssub.s32 3, %s337
        %p339 = scmp.lt.s32.totalorder %s338, 2
        %s340 = scalar_select %p339, %s338, 2
        %s341 = smul.u32 128, %s340
        %s342 = smul.u32 %s341, 2
        %v344 = vld [vmem:[%s293] sm:$0xff]
        %v345 = vld [vmem:[%s293 + $0x8] sm:$0xff]
        %v346 = vpack.c.bf16 %v345, %v344
        %v347 = vld [vmem:[#allocation5] sm:$0xff]
        %v348 = vld [vmem:[#allocation5 + $0x8] sm:$0xff]
        %v349 = vld [vmem:[#allocation5 + $0x10] sm:$0xff]
        %v350 = vld [vmem:[#allocation5 + $0x18] sm:$0xff]
        %v351 = vld [vmem:[#allocation5 + $0x20] sm:$0xff]
        %v352 = vld [vmem:[#allocation5 + $0x28] sm:$0xff]
        %v353 = vld [vmem:[#allocation5 + $0x30] sm:$0xff]
        %v354 = vld [vmem:[#allocation5 + $0x38] sm:$0xff]
        %v355 = vpack.c.bf16 %v349, %v347
        %v356 = vpack.c.bf16 %v350, %v348
        %v357 = vpack.c.bf16 %v353, %v351
        %v358 = vpack.c.bf16 %v354, %v352
        %v359 = vld [vmem:[#allocation7] sm:$0xff]
        %v360 = vld [vmem:[#allocation7 + $0x8] sm:$0xff]
        %v361 = vld [vmem:[#allocation7 + $0x10] sm:$0xff]
        %v362 = vld [vmem:[#allocation7 + $0x18] sm:$0xff]
        %v363 = vld [vmem:[#allocation7 + $0x20] sm:$0xff]
        %v364 = vld [vmem:[#allocation7 + $0x28] sm:$0xff]
        %v365 = vld [vmem:[#allocation7 + $0x30] sm:$0xff]
        %v366 = vld [vmem:[#allocation7 + $0x38] sm:$0xff]
        %v367 = vld [vmem:[#allocation7 + $0x40] sm:$0xff]
        %v368 = vld [vmem:[#allocation7 + $0x48] sm:$0xff]
        %v369 = vld [vmem:[#allocation7 + $0x50] sm:$0xff]
        %v370 = vld [vmem:[#allocation7 + $0x58] sm:$0xff]
        %v371 = vld [vmem:[#allocation7 + $0x60] sm:$0xff]
        %v372 = vld [vmem:[#allocation7 + $0x68] sm:$0xff]
        %v373 = vld [vmem:[#allocation7 + $0x70] sm:$0xff]
        %v374 = vld [vmem:[#allocation7 + $0x78] sm:$0xff]
        %v375 = vld [vmem:[#allocation7 + $0x80] sm:$0xff]
        %v376 = vld [vmem:[#allocation7 + $0x88] sm:$0xff]
        %v377 = vld [vmem:[#allocation7 + $0x90] sm:$0xff]
        %v378 = vld [vmem:[#allocation7 + $0x98] sm:$0xff]
        %v379 = vld [vmem:[#allocation7 + $0xa0] sm:$0xff]
        %v380 = vld [vmem:[#allocation7 + $0xa8] sm:$0xff]
        %v381 = vld [vmem:[#allocation7 + $0xb0] sm:$0xff]
        %v382 = vld [vmem:[#allocation7 + $0xb8] sm:$0xff]
        %v383 = vld [vmem:[#allocation7 + $0xc0] sm:$0xff]
        %v384 = vld [vmem:[#allocation7 + $0xc8] sm:$0xff]
        %v385 = vld [vmem:[#allocation7 + $0xd0] sm:$0xff]
        %v386 = vld [vmem:[#allocation7 + $0xd8] sm:$0xff]
        %v387 = vld [vmem:[#allocation7 + $0xe0] sm:$0xff]
        %v388 = vld [vmem:[#allocation7 + $0xe8] sm:$0xff]
        %v389 = vld [vmem:[#allocation7 + $0xf0] sm:$0xff]
        %v390 = vld [vmem:[#allocation7 + $0xf8] sm:$0xff]
        %v391 = vld [vmem:[#allocation7 + $0x100] sm:$0xff]
        %v392 = vld [vmem:[#allocation7 + $0x108] sm:$0xff]
        %v393 = vld [vmem:[#allocation7 + $0x110] sm:$0xff]
        %v394 = vld [vmem:[#allocation7 + $0x118] sm:$0xff]
        %v395 = vld [vmem:[#allocation7 + $0x120] sm:$0xff]
        %v396 = vld [vmem:[#allocation7 + $0x128] sm:$0xff]
        %v397 = vld [vmem:[#allocation7 + $0x130] sm:$0xff]
        %v398 = vld [vmem:[#allocation7 + $0x138] sm:$0xff]
        %v399 = vld [vmem:[#allocation7 + $0x140] sm:$0xff]
        %v400 = vld [vmem:[#allocation7 + $0x148] sm:$0xff]
        %v401 = vld [vmem:[#allocation7 + $0x150] sm:$0xff]
        %v402 = vld [vmem:[#allocation7 + $0x158] sm:$0xff]
        %v403 = vld [vmem:[#allocation7 + $0x160] sm:$0xff]
        %v404 = vld [vmem:[#allocation7 + $0x168] sm:$0xff]
        %v405 = vld [vmem:[#allocation7 + $0x170] sm:$0xff]
        %v406 = vld [vmem:[#allocation7 + $0x178] sm:$0xff]
        %v407 = vld [vmem:[#allocation7 + $0x180] sm:$0xff]
        %v408 = vld [vmem:[#allocation7 + $0x188] sm:$0xff]
        %v409 = vld [vmem:[#allocation7 + $0x190] sm:$0xff]
        %v410 = vld [vmem:[#allocation7 + $0x198] sm:$0xff]
        %v411 = vld [vmem:[#allocation7 + $0x1a0] sm:$0xff]
        %v412 = vld [vmem:[#allocation7 + $0x1a8] sm:$0xff]
        %v413 = vld [vmem:[#allocation7 + $0x1b0] sm:$0xff]
        %v414 = vld [vmem:[#allocation7 + $0x1b8] sm:$0xff]
        %v415 = vld [vmem:[#allocation7 + $0x1c0] sm:$0xff]
        %v416 = vld [vmem:[#allocation7 + $0x1c8] sm:$0xff]
        %v417 = vld [vmem:[#allocation7 + $0x1d0] sm:$0xff]
        %v418 = vld [vmem:[#allocation7 + $0x1d8] sm:$0xff]
        %v419 = vld [vmem:[#allocation7 + $0x1e0] sm:$0xff]
        %v420 = vld [vmem:[#allocation7 + $0x1e8] sm:$0xff]
        %v421 = vld [vmem:[#allocation7 + $0x1f0] sm:$0xff]
        %v422 = vld [vmem:[#allocation7 + $0x1f8] sm:$0xff]
        %v423 = vpack.c.bf16 %v361, %v359
        %v424 = vpack.c.bf16 %v362, %v360
        %v425 = vpack.c.bf16 %v365, %v363
        %v426 = vpack.c.bf16 %v366, %v364
        %v427 = vpack.c.bf16 %v369, %v367
        %v428 = vpack.c.bf16 %v370, %v368
        %v429 = vpack.c.bf16 %v373, %v371
        %v430 = vpack.c.bf16 %v374, %v372
        %v431 = vpack.c.bf16 %v377, %v375
        %v432 = vpack.c.bf16 %v378, %v376
        %v433 = vpack.c.bf16 %v381, %v379
        %v434 = vpack.c.bf16 %v382, %v380
        %v435 = vpack.c.bf16 %v385, %v383
        %v436 = vpack.c.bf16 %v386, %v384
        %v437 = vpack.c.bf16 %v389, %v387
        %v438 = vpack.c.bf16 %v390, %v388
        %v439 = vpack.c.bf16 %v393, %v391
        %v440 = vpack.c.bf16 %v394, %v392
        %v441 = vpack.c.bf16 %v397, %v395
        %v442 = vpack.c.bf16 %v398, %v396
        %v443 = vpack.c.bf16 %v401, %v399
        %v444 = vpack.c.bf16 %v402, %v400
        %v445 = vpack.c.bf16 %v405, %v403
        %v446 = vpack.c.bf16 %v406, %v404
        %v447 = vpack.c.bf16 %v409, %v407
        %v448 = vpack.c.bf16 %v410, %v408
        %v449 = vpack.c.bf16 %v413, %v411
        %v450 = vpack.c.bf16 %v414, %v412
        %v451 = vpack.c.bf16 %v417, %v415
        %v452 = vpack.c.bf16 %v418, %v416
        %v453 = vpack.c.bf16 %v421, %v419
        %v454 = vpack.c.bf16 %v422, %v420
        %v455 = vld [vmem:[%s2] sm:$0x3]
        %v456 = vld [vmem:[%s4] sm:$0x3]
        %v457 = vld [vmem:[%s5] sm:$0x3]
        %v458 = vld [vmem:[%s6] sm:$0x3]
        %v460 = vlaneseq
        %v461 = vshrl.u32 %v460, 7
        %v462 = vsub.s32 0, %v461
        %v463 = vrot.slane %v455, %v462
        %v464 = vlaneseq
        %v465 = vshrl.u32 %v464, 7
        %v466 = vsub.s32 1, %v465
        %v467 = vrot.slane %v455, %v466
        %vm470 = vcmask 261120
        %v472 = vsel %vm470, %v346, 0
        %474 = vmatprep.subr.bf16.mxu0 %v356
        %475 = vmatpush1.bf16.msra.mxu0 %v355
        %476 = vmatprep.subr.bf16.mxu0 %v358
        %477 = vmatpush1.bf16.msra.mxu0 %v357
        %478 = vmatprep.subr.bf16.mxu0 0
        %479 = vmatpush1.bf16.msra.mxu0 0
        %480 = vmatprep.subr.bf16.mxu0 0
        %481 = vmatpush1.bf16.msra.mxu0 0
        %482 = vmatprep.subr.bf16.mxu0 0
        %483 = vmatpush1.bf16.msra.mxu0 0
        %484 = vmatprep.subr.bf16.mxu0 0
        %485 = vmatpush1.bf16.msra.mxu0 0
        %486 = vmatprep.subr.bf16.mxu0 0
        %487 = vmatpush1.bf16.msra.mxu0 0
        %488 = vmatprep.subr.bf16.mxu0 0
        %489 = vmatpush1.bf16.msra.mxu0 0
        %490 = vmatprep.subr.bf16.mxu0 0
        %491 = vmatpush1.bf16.msra.mxu0 0
        %492 = vmatprep.subr.bf16.mxu0 0
        %493 = vmatpush1.bf16.msra.mxu0 0
        %494 = vmatprep.subr.bf16.mxu0 0
        %495 = vmatpush1.bf16.msra.mxu0 0
        %496 = vmatprep.subr.bf16.mxu0 0
        %497 = vmatpush1.bf16.msra.mxu0 0
        %498 = vmatprep.subr.bf16.mxu0 0
        %499 = vmatpush1.bf16.msra.mxu0 0
        %500 = vmatprep.subr.bf16.mxu0 0
        %501 = vmatpush1.bf16.msra.mxu0 0
        %502 = vmatprep.subr.bf16.mxu0 0
        %503 = vmatpush1.bf16.msra.mxu0 0
        %504 = vmatprep.subr.bf16.mxu0 0
        %505 = vmatpush1.bf16.msra.mxu0 0
        %506 = vmatprep.mubr.bf16.mxu0 0
        %507 = vmatmul.mubr.bf16.gmra.mrb[0].mxu0 %v472
        %v508 = vpop.f32.mrb[0].mxu0
        %v509 = vadd.f32 %v463, %v508
        %v510 = vpop.f32.mrb[0].mxu0
        %v511 = vadd.f32 %v467, %v510
        %v512 = vpop.f32.mrb[0].mxu0
        %v513 = vadd.f32 %v463, %v512
        %v514 = vpop.f32.mrb[0].mxu0
        %v515 = vadd.f32 %v467, %v514
        %516 = vdwg.mxu0
        %v517 = vmul.f32 %v509, 0.5
        %v518 = vmul.f32 %v511, 0.5
        %v519 = vmul.f32 %v513, 0.5
        %v520 = vmul.f32 %v515, 0.5
        %v521 = vmul.f32 %v509, 0.70710677
        %v522 = vmul.f32 %v511, 0.70710677
        %v523 = vmul.f32 %v513, 0.70710677
        %v524 = vmul.f32 %v515, 0.70710677
        %v525 = verf.f32.pop %v521
        %v526 = verf.f32.pop %v522
        %v527 = verf.f32.pop %v523
        %v528 = verf.f32.pop %v524
        %v529 = vadd.f32 %v525, 1.0
        %v530 = vadd.f32 %v526, 1.0
        %v531 = vadd.f32 %v527, 1.0
        %v532 = vadd.f32 %v528, 1.0
        %v533 = vmul.f32 %v517, %v529
        %v534 = vmul.f32 %v518, %v530
        %v535 = vmul.f32 %v519, %v531
        %v536 = vmul.f32 %v520, %v532
        %v537 = vpack.c.bf16 %v535, %v533
        %v538 = vpack.c.bf16 %v536, %v534
        %539 = vmatprep.subr.bf16.mxu0 %v424
        %540 = vmatpush1.bf16.msra.mxu0 %v423
        %541 = vmatprep.subr.bf16.mxu0 %v426
        %542 = vmatpush1.bf16.msra.mxu0 %v425
        %543 = vmatprep.subr.bf16.mxu0 %v428
        %544 = vmatpush1.bf16.msra.mxu0 %v427
        %545 = vmatprep.subr.bf16.mxu0 %v430
        %546 = vmatpush1.bf16.msra.mxu0 %v429
        %547 = vmatprep.subr.bf16.mxu0 %v432
        %548 = vmatpush1.bf16.msra.mxu0 %v431
        %549 = vmatprep.subr.bf16.mxu0 %v434
        %550 = vmatpush1.bf16.msra.mxu0 %v433
        %551 = vmatprep.subr.bf16.mxu0 %v436
        %552 = vmatpush1.bf16.msra.mxu0 %v435
        %553 = vmatprep.subr.bf16.mxu0 %v438
        %554 = vmatpush1.bf16.msra.mxu0 %v437
        %555 = vmatprep.subr.bf16.mxu0 %v440
        %556 = vmatpush1.bf16.msra.mxu0 %v439
        %557 = vmatprep.subr.bf16.mxu0 %v442
        %558 = vmatpush1.bf16.msra.mxu0 %v441
        %559 = vmatprep.subr.bf16.mxu0 %v444
        %560 = vmatpush1.bf16.msra.mxu0 %v443
        %561 = vmatprep.subr.bf16.mxu0 %v446
        %562 = vmatpush1.bf16.msra.mxu0 %v445
        %563 = vmatprep.subr.bf16.mxu0 %v448
        %564 = vmatpush1.bf16.msra.mxu0 %v447
        %565 = vmatprep.subr.bf16.mxu0 %v450
        %566 = vmatpush1.bf16.msra.mxu0 %v449
        %567 = vmatprep.subr.bf16.mxu0 %v452
        %568 = vmatpush1.bf16.msra.mxu0 %v451
        %569 = vmatprep.subr.bf16.mxu0 %v454
        %570 = vmatpush1.bf16.msra.mxu0 %v453
        %571 = vmatprep.mubr.bf16.mxu0 %v538
        %572 = vmatmul.mubr.bf16.gmra.mrb[0].mxu0 %v537
        %v573 = vpop.f32.mrb[0].mxu0
        %v574 = vadd.f32 %v509, %v573
        %v575 = vpop.f32.mrb[0].mxu0
        %v576 = vadd.f32 %v511, %v575
        %v577 = vpop.f32.mrb[0].mxu0
        %v578 = vadd.f32 %v513, %v577
        %v579 = vpop.f32.mrb[0].mxu0
        %v580 = vadd.f32 %v515, %v579
        %581 = vdwg.mxu0
        %v583 = vlaneseq
        %v584 = vshrl.u32 %v583, 7
        %v585 = vsub.s32 0, %v584
        %v586 = vrot.slane %v456, %v585
        %v587 = vlaneseq
        %v588 = vshrl.u32 %v587, 7
        %v589 = vsub.s32 1, %v588
        %v590 = vrot.slane %v456, %v589
        %v593 = vadd.f32 %v574, %v586
        %v594 = vadd.f32 %v576, %v590
        %v595 = vadd.f32 %v578, %v586
        %v596 = vadd.f32 %v580, %v590
        %v597 = vadd.f32 %v593, %v594
        %598 = vadd.xlane.f32.xlu0 %v597
        %v599 = vpop.xlane.xlu0 %598
        %v600 = vadd.f32 %v595, %v596
        %601 = vadd.xlane.f32.xlu0 %v600
        %v602 = vpop.xlane.xlu0 %601
        %v603 = vmul.f32 %v593, %v593
        %v604 = vmul.f32 %v594, %v594
        %v605 = vmul.f32 %v595, %v595
        %v606 = vmul.f32 %v596, %v596
        %v607 = vadd.f32 %v603, %v604
        %608 = vadd.xlane.f32.xlu0 %v607
        %v609 = vpop.xlane.xlu0 %608
        %v610 = vadd.f32 %v605, %v606
        %611 = vadd.xlane.f32.xlu0 %v610
        %v612 = vpop.xlane.xlu0 %611
        %v613 = vmul.f32 %v599, 0.00390625
        %v614 = vmul.f32 %v602, 0.00390625
        %v615 = vmul.f32 %v609, 0.00390625
        %v616 = vmul.f32 %v612, 0.00390625
        %v617 = vmul.f32 %v613, %v613
        %v618 = vmul.f32 %v614, %v614
        %v619 = vsub.f32 %v615, %v617
        %v620 = vsub.f32 %v616, %v618
        %v621 = vsub.f32 %v593, %v613
        %v622 = vsub.f32 %v594, %v613
        %v623 = vsub.f32 %v595, %v614
        %v624 = vsub.f32 %v596, %v614
        %v625 = vadd.f32 %v619, 1e-05
        %v626 = vadd.f32 %v620, 1e-05
        %v627 = vrsqrt.pop %v625
        %v628 = vrsqrt.pop %v626
        %v629 = vmul.f32 %v621, %v627
        %v630 = vmul.f32 %v622, %v627
        %v631 = vmul.f32 %v623, %v628
        %v632 = vmul.f32 %v624, %v628
        %v634 = vlaneseq
        %v635 = vshrl.u32 %v634, 7
        %v636 = vsub.s32 0, %v635
        %v637 = vrot.slane %v457, %v636
        %v638 = vlaneseq
        %v639 = vshrl.u32 %v638, 7
        %v640 = vsub.s32 1, %v639
        %v641 = vrot.slane %v457, %v640
        %v644 = vmul.f32 %v629, %v637
        %v645 = vmul.f32 %v630, %v641
        %v646 = vmul.f32 %v631, %v637
        %v647 = vmul.f32 %v632, %v641
        %v649 = vlaneseq
        %v650 = vshrl.u32 %v649, 7
        %v651 = vsub.s32 0, %v650
        %v652 = vrot.slane %v458, %v651
        %v653 = vlaneseq
        %v654 = vshrl.u32 %v653, 7
        %v655 = vsub.s32 1, %v654
        %v656 = vrot.slane %v458, %v655
        %v659 = vadd.f32 %v644, %v652
        %v660 = vadd.f32 %v645, %v656
        %v661 = vadd.f32 %v646, %v652
        %v662 = vadd.f32 %v647, %v656
        %663 = vst [vmem:[%s331] sm:$0xff] %v659
        %664 = vst [vmem:[%s331 + $0x8] sm:$0xff] %v660
        %665 = vst [vmem:[%s331 + $0x10] sm:$0xff] %v661
        %666 = vst [vmem:[%s331 + $0x18] sm:$0xff] %v662
        %s667 = sand.u32 %s185, 1
        %s668 = scalar_lea.sflag [#allocation4], %s667
        %s669 = sand.u32 %s185, 1
        %s670 = smul.addr %s669, 32
        %s671 = scalar_lea.vmem [#allocation8], %s670
        // Predicated region
        $region61: #{tpu_custom_call.1} parent=47 // pred_check
          %p672 = pneg %p195
        $region62: #{tpu_custom_call.1} parent=47 // pred_check_branch
          %674 = sbr.rel (%p672) target = $region64
        $region63: #{tpu_custom_call.1} parent=47 // pred_region
          %s675 = smul.u32 2, %s25
          %s676 = ssub.s32 3, %s675
          %p677 = scmp.lt.s32.totalorder %s676, 2
          %s678 = scalar_select %p677, %s676, 2
          %s679 = smul.u32 128, %s678
          %s680 = smul.u32 %s679, 2
          %s682 = ssub.s32 512, %s680
          %683 = vsyncadd %s668, %s682
          %p684 = scmp.ne.s32.totalorder 0, %s680
          %s685 = smul.addr %s675, 2
          %s686 = smul.addr %s685, 128
          %s687 = scalar_lea.hbm %s7, %s686
          %s688 = smul.u32 16, %s678
          %s689 = sshll.u32 %s671, 4
          %s690 = int_to_ptr.vmem [resolvable:$true] %s689
          %s691 = sshll.u32 %s688, 4
          %695 = dma.vmem_to_hbm [thread:$0]  (%p684), %s690, %s691, %s687, %s668, 256, 256, 16
        $region64: #{tpu_custom_call.1} parent=47 // pred_fallthru
          _
      $region48: #{tpu_custom_call.1} parent=5 // pred_fallthru
        _
      %p696 = scmp.le.s32.totalorder 2, %s20
      // Predicated region
      $region65: #{tpu_custom_call.1} parent=5 // pred_check
        %p697 = pneg %p696
      $region66: #{tpu_custom_call.1} parent=5 // pred_check_branch
        %699 = sbr.rel (%p697) target = $region68
      $region67: #{tpu_custom_call.1} parent=5 // pred_region
        %s700 = ssub.s32 %s20, 2
        // Predicated region
        $region69: #{tpu_custom_call.1} parent=67 // pred_check
          %p701 = pneg %p201
        $region70: #{tpu_custom_call.1} parent=67 // pred_check_branch
          %703 = sbr.rel (%p701) target = $region72
        $region71: #{tpu_custom_call.1} parent=67 // pred_region
          %s704 = sand.u32 %s186, 1
          %s705 = scalar_lea.sflag [#allocation4], %s704
          %s706 = sand.u32 %s186, 1
          %s707 = smul.addr %s706, 32
          %s708 = scalar_lea.vmem [#allocation8], %s707
          %709 = dma.done %s705, 512
        $region72: #{tpu_custom_call.1} parent=67 // pred_fallthru
          _
      $region68: #{tpu_custom_call.1} parent=5 // pred_fallthru
        _
    $region6: #{tpu_custom_call.1} parent=1 // loop_footer
      %s24 = sadd.s32 1, %s20
    $region7: #{tpu_custom_call.1} parent=1 // loop_footer_branch
      %19 = sbr.rel target = $region3
    $region8: #{tpu_custom_call.1} parent=1 // loop_exit
      _
    %710 = vsyncpa [#allocation3], 1
    %s711 = scalar_lea.sflag [#allocation3], 1
    %712 = vsyncpa %s711, 1
    %713 = vsyncpa [#allocation6], 1
    %714 = vsyncpa [#allocation4], 1
    %s715 = scalar_lea.sflag [#allocation4], 1
    %716 = vsyncpa %s715, 1

</llo_original>
